<compile_context>
chip_gen: v5e
topology: v5e:2x2
jax: 0.10.0
libtpu: 0.0.40
codegen_flags: <defaults>
</compile_context>

<pallas_src>
import math

import jax
import jax.numpy as jnp
from jax.experimental import pallas as pl
from jax.experimental.pallas import tpu as pltpu


def _round_up(n, m):
    return ((n + m - 1) // m) * m


def qnet_kernel(x_ref, a_ref,
                w1x_ref, w1a_ref, b1_ref,
                w2_ref, b2_ref,
                w3_ref, b3_ref,
                w4_ref, b4_ref,
                out_ref):
    """Fused MLP tile in transposed (feature, batch) layout.

    x_ref: (obs, TB), a_ref: (act, TB) activation tiles (f32 or bf16).
    w1x/w1a/w2/w3: bf16 (out, in) weights -> MXU, f32 accumulation.
    b1/b2/b3: (64, 1) f32 columns, w4_ref: (64, 1) f32, b4_ref: (1, 1) f32 SMEM.
    out_ref: (1, TB) f32 lane-dense row.
    """
    x = x_ref[...].astype(jnp.bfloat16)          # (obs, TB)
    a = a_ref[...].astype(jnp.bfloat16)          # (act, TB)

    # fc1: split matmul replaces concat([x, a]) @ W1 (transposed).
    h = (jnp.dot(w1x_ref[...], x, preferred_element_type=jnp.float32)
         + jnp.dot(w1a_ref[...], a, preferred_element_type=jnp.float32)
         + b1_ref[...])                          # (64, TB) f32
    h = jnp.maximum(h, 0.0)

    h = jnp.dot(w2_ref[...], h.astype(jnp.bfloat16),
                preferred_element_type=jnp.float32) + b2_ref[...]
    h = jnp.maximum(h, 0.0)

    h = jnp.dot(w3_ref[...], h.astype(jnp.bfloat16),
                preferred_element_type=jnp.float32) + b3_ref[...]
    h = jnp.maximum(h, 0.0)

    # fc4 (out_features == 1): sublane (XLU) reduction -> lane-dense (1, TB).
    out_ref[...] = (jnp.sum(w4_ref[...] * h, axis=0, keepdims=True)
                    + b4_ref[0, 0])


def qnetwork_forward(x, a, params, *, block_b=4096):
    """Equivalent of QNetwork.forward(x, a): (B, obs), (B, act) -> (B, 1)."""
    B, obs_dim = x.shape
    act_dim = a.shape[1]
    H = params["w2"].shape[0]

    # Batch tile on the lane axis: multiple of 128, bounded by block_b.
    TB = min(_round_up(block_b, 128), _round_up(B, 128))
    B_pad = _round_up(B, TB)
    n_blocks = B_pad // TB

    # Transposed, padded activations: (features, B_pad). Padded columns compute
    # garbage (ReLU of biases) and are sliced off before returning.
    x_t = x.T
    a_t = a.T
    if B_pad != B:
        x_t = jnp.pad(x_t, ((0, 0), (0, B_pad - B)))
        a_t = jnp.pad(a_t, ((0, 0), (0, B_pad - B)))

    bf16 = jnp.bfloat16
    # (out, in) bf16 weights for the transposed matmuls.
    w1x = params["w1"][:obs_dim].T.astype(bf16)   # (H, obs)
    w1a = params["w1"][obs_dim:].T.astype(bf16)   # (H, act)
    w2 = params["w2"].T.astype(bf16)              # (H, H)
    w3 = params["w3"].T.astype(bf16)              # (H, H)
    w4 = params["w4"].reshape(H, 1)               # (H, 1) f32 (VPU/XLU path)
    b1 = params["b1"].reshape(H, 1)
    b2 = params["b2"].reshape(H, 1)
    b3 = params["b3"].reshape(H, 1)
    b4 = params["b4"].reshape(1, 1)               # scalar -> SMEM

    const2 = lambda shape: pl.BlockSpec(shape, lambda i: (0, 0))
    in_specs = [
        pl.BlockSpec((obs_dim, TB), lambda i: (0, i)),   # x^T
        pl.BlockSpec((act_dim, TB), lambda i: (0, i)),   # a^T
        const2((H, obs_dim)),                            # w1x^T
        const2((H, act_dim)),                            # w1a^T
        const2((H, 1)),                                  # b1
        const2((H, H)),                                  # w2^T
        const2((H, 1)),                                  # b2
        const2((H, H)),                                  # w3^T
        const2((H, 1)),                                  # b3
        const2((H, 1)),                                  # w4 column
        pl.BlockSpec(memory_space=pltpu.MemorySpace.SMEM),  # b4 scalar
    ]
    out_specs = pl.BlockSpec((1, TB), lambda i: (0, i))

    itemsize = jnp.dtype(x.dtype).itemsize
    weight_bytes = (2 * (obs_dim * H + act_dim * H + 2 * H * H)  # bf16
                    + 4 * (3 * H + H + 1))                       # f32 biases+w4
    cost = pl.CostEstimate(
        flops=2 * B_pad * ((obs_dim + act_dim) * H + 2 * H * H + H),
        transcendentals=0,
        bytes_accessed=B_pad * (obs_dim + act_dim) * itemsize
                       + B_pad * 4 + weight_bytes,
    )

    out = pl.pallas_call(
        qnet_kernel,
        out_shape=jax.ShapeDtypeStruct((1, B_pad), jnp.float32),
        grid=(n_blocks,),
        in_specs=in_specs,
        out_specs=out_specs,
        compiler_params=pltpu.CompilerParams(
            dimension_semantics=("parallel",)),
        cost_estimate=cost,
    )(x_t, a_t, w1x, w1a, b1, w2, b2, w3, b3, w4, b4)

    return out[0, :B].reshape(B, 1)


def init_qnetwork_params(key, obs_dim, act_dim, hidden=64):
    """Deterministic init mimicking torch.nn.Linear default (uniform +/- 1/sqrt(fan_in))."""
    in_dim = obs_dim + act_dim
    dims = [(in_dim, hidden), (hidden, hidden), (hidden, hidden), (hidden, 1)]
    params = {}
    for i, (fan_in, fan_out) in enumerate(dims, start=1):
        key, kw, kb = jax.random.split(key, 3)
        bound = 1.0 / math.sqrt(fan_in)
        params[f"w{i}"] = jax.random.uniform(
            kw, (fan_in, fan_out), jnp.float32, minval=-bound, maxval=bound)
        params[f"b{i}"] = jax.random.uniform(
            kb, (1, fan_out), jnp.float32, minval=-bound, maxval=bound)
    return params


def qnetwork_forward_ref(x, a, params):
    """Pure-JAX f32 reference (matches the PyTorch module)."""
    h = jnp.concatenate([x, a], axis=1)
    h = jax.nn.relu(h @ params["w1"] + params["b1"])
    h = jax.nn.relu(h @ params["w2"] + params["b2"])
    h = jax.nn.relu(h @ params["w3"] + params["b3"])
    return h @ params["w4"] + params["b4"]


if __name__ == "__main__":
    key = jax.random.PRNGKey(0)
    kp, kx, ka, kx2, ka2 = jax.random.split(key, 5)

    obs_dim, act_dim = 8, 3
    params = init_qnetwork_params(kp, obs_dim, act_dim, hidden=64)

    # Small-shape check (single grid block).
    batch = 2
    x = jax.random.normal(kx, (batch, obs_dim), jnp.float32)
    a = jax.random.normal(ka, (batch, act_dim), jnp.float32)
    out = jax.block_until_ready(qnetwork_forward(x, a, params))
    ref = qnetwork_forward_ref(x, a, params)
    assert out.shape == (batch, 1), out.shape
    # bf16 MXU inputs (f32 accumulation) -> loose tolerance vs. f32 reference.
    assert jnp.allclose(out, ref, atol=2e-2, rtol=2e-2), (out, ref)

    # Multi-block grid + padding check (batch not a multiple of the tile).
    batch2 = 257
    x2 = jax.random.normal(kx2, (batch2, obs_dim), jnp.float32)
    a2 = jax.random.normal(ka2, (batch2, act_dim), jnp.float32)
    out2 = jax.block_until_ready(qnetwork_forward(x2, a2, params, block_b=128))
    ref2 = qnetwork_forward_ref(x2, a2, params)
    assert out2.shape == (batch2, 1), out2.shape
    assert jnp.allclose(out2, ref2, atol=2e-2, rtol=2e-2)

    print("KERNEL_OK")
</pallas_src>

<mosaic_0001>
module attributes {stable_mosaic.version = 11 : i64} {
  func.func @qnet_kernel(%arg0: i32, %arg1: memref<8x128xf32, #tpu.memory_space<vmem>>, %arg2: memref<3x128xf32, #tpu.memory_space<vmem>>, %arg3: memref<64x8xbf16, #tpu.memory_space<vmem>>, %arg4: memref<64x3xbf16, #tpu.memory_space<vmem>>, %arg5: memref<64x1xf32, #tpu.memory_space<vmem>>, %arg6: memref<64x64xbf16, #tpu.memory_space<vmem>>, %arg7: memref<64x1xf32, #tpu.memory_space<vmem>>, %arg8: memref<64x64xbf16, #tpu.memory_space<vmem>>, %arg9: memref<64x1xf32, #tpu.memory_space<vmem>>, %arg10: memref<64x1xf32, #tpu.memory_space<vmem>>, %arg11: memref<1x1xf32, #tpu.memory_space<smem>>, %arg12: memref<1x128xf32, #tpu.memory_space<vmem>>) attributes {dimension_semantics = [#tpu.dimension_semantics<parallel>], iteration_bounds = array<i64: 1>, scalar_prefetch = 0 : i64, scratch_operands = 0 : i64, tpu.core_type = #tpu.core_type<tc>, window_params = [{transform_indices = @transform_0, window_bounds = array<i64: 8, 128>}, {transform_indices = @transform_1, window_bounds = array<i64: 3, 128>}, {pipeline_mode = #tpu.pipeline_mode<synchronous>, transform_indices = @transform_2, window_bounds = array<i64: 64, 8>}, {pipeline_mode = #tpu.pipeline_mode<synchronous>, transform_indices = @transform_3, window_bounds = array<i64: 64, 3>}, {pipeline_mode = #tpu.pipeline_mode<synchronous>, transform_indices = @transform_4, window_bounds = array<i64: 64, 1>}, {pipeline_mode = #tpu.pipeline_mode<synchronous>, transform_indices = @transform_5, window_bounds = array<i64: 64, 64>}, {pipeline_mode = #tpu.pipeline_mode<synchronous>, transform_indices = @transform_6, window_bounds = array<i64: 64, 1>}, {pipeline_mode = #tpu.pipeline_mode<synchronous>, transform_indices = @transform_7, window_bounds = array<i64: 64, 64>}, {pipeline_mode = #tpu.pipeline_mode<synchronous>, transform_indices = @transform_8, window_bounds = array<i64: 64, 1>}, {pipeline_mode = #tpu.pipeline_mode<synchronous>, transform_indices = @transform_9, window_bounds = array<i64: 64, 1>}, {transform_indices = @transform_10, window_bounds = array<i64: 1, 1>}, {transform_indices = @transform_11, window_bounds = array<i64: 1, 128>}]} {
    %c0 = arith.constant 0 : index
    %c0_0 = arith.constant 0 : index
    %0 = vector.load %arg1[%c0, %c0_0] : memref<8x128xf32, #tpu.memory_space<vmem>>, vector<8x128xf32>
    %1 = arith.truncf %0 : vector<8x128xf32> to vector<8x128xbf16>
    %c0_1 = arith.constant 0 : index
    %c0_2 = arith.constant 0 : index
    %2 = vector.load %arg2[%c0_1, %c0_2] : memref<3x128xf32, #tpu.memory_space<vmem>>, vector<3x128xf32>
    %3 = arith.truncf %2 : vector<3x128xf32> to vector<3x128xbf16>
    %c0_3 = arith.constant 0 : index
    %c0_4 = arith.constant 0 : index
    %4 = vector.load %arg3[%c0_3, %c0_4] : memref<64x8xbf16, #tpu.memory_space<vmem>>, vector<64x8xbf16>
    %cst = arith.constant dense<0.000000e+00> : vector<64x128xf32>
    %5 = tpu.matmul %4, %1, %cst {dimension_numbers = #tpu.dot_dimension_numbers<[1], [0], [0], [1], [0, 0, 1, 1], [], []>} : vector<64x8xbf16>, vector<8x128xbf16>, vector<64x128xf32> -> vector<64x128xf32>
    %c0_5 = arith.constant 0 : index
    %c0_6 = arith.constant 0 : index
    %6 = vector.load %arg4[%c0_5, %c0_6] : memref<64x3xbf16, #tpu.memory_space<vmem>>, vector<64x3xbf16>
    %cst_7 = arith.constant dense<0.000000e+00> : vector<64x128xf32>
    %7 = tpu.matmul %6, %3, %cst_7 {dimension_numbers = #tpu.dot_dimension_numbers<[1], [0], [0], [1], [0, 0, 1, 1], [], []>} : vector<64x3xbf16>, vector<3x128xbf16>, vector<64x128xf32> -> vector<64x128xf32>
    %8 = arith.addf %5, %7 : vector<64x128xf32>
    %c0_8 = arith.constant 0 : index
    %c0_9 = arith.constant 0 : index
    %9 = vector.load %arg5[%c0_8, %c0_9] : memref<64x1xf32, #tpu.memory_space<vmem>>, vector<64x1xf32>
    %10 = vector.broadcast %9 : vector<64x1xf32> to vector<64x128xf32>
    %11 = arith.addf %8, %10 : vector<64x128xf32>
    %cst_10 = arith.constant 0.000000e+00 : f32
    %12 = vector.broadcast %cst_10 : f32 to vector<64x128xf32>
    %13 = arith.maximumf %11, %12 : vector<64x128xf32>
    %c0_11 = arith.constant 0 : index
    %c0_12 = arith.constant 0 : index
    %14 = vector.load %arg6[%c0_11, %c0_12] : memref<64x64xbf16, #tpu.memory_space<vmem>>, vector<64x64xbf16>
    %15 = arith.truncf %13 : vector<64x128xf32> to vector<64x128xbf16>
    %cst_13 = arith.constant dense<0.000000e+00> : vector<64x128xf32>
    %16 = tpu.matmul %14, %15, %cst_13 {dimension_numbers = #tpu.dot_dimension_numbers<[1], [0], [0], [1], [0, 0, 1, 1], [], []>} : vector<64x64xbf16>, vector<64x128xbf16>, vector<64x128xf32> -> vector<64x128xf32>
    %c0_14 = arith.constant 0 : index
    %c0_15 = arith.constant 0 : index
    %17 = vector.load %arg7[%c0_14, %c0_15] : memref<64x1xf32, #tpu.memory_space<vmem>>, vector<64x1xf32>
    %18 = vector.broadcast %17 : vector<64x1xf32> to vector<64x128xf32>
    %19 = arith.addf %16, %18 : vector<64x128xf32>
    %cst_16 = arith.constant 0.000000e+00 : f32
    %20 = vector.broadcast %cst_16 : f32 to vector<64x128xf32>
    %21 = arith.maximumf %19, %20 : vector<64x128xf32>
    %c0_17 = arith.constant 0 : index
    %c0_18 = arith.constant 0 : index
    %22 = vector.load %arg8[%c0_17, %c0_18] : memref<64x64xbf16, #tpu.memory_space<vmem>>, vector<64x64xbf16>
    %23 = arith.truncf %21 : vector<64x128xf32> to vector<64x128xbf16>
    %cst_19 = arith.constant dense<0.000000e+00> : vector<64x128xf32>
    %24 = tpu.matmul %22, %23, %cst_19 {dimension_numbers = #tpu.dot_dimension_numbers<[1], [0], [0], [1], [0, 0, 1, 1], [], []>} : vector<64x64xbf16>, vector<64x128xbf16>, vector<64x128xf32> -> vector<64x128xf32>
    %c0_20 = arith.constant 0 : index
    %c0_21 = arith.constant 0 : index
    %25 = vector.load %arg9[%c0_20, %c0_21] : memref<64x1xf32, #tpu.memory_space<vmem>>, vector<64x1xf32>
    %26 = vector.broadcast %25 : vector<64x1xf32> to vector<64x128xf32>
    %27 = arith.addf %24, %26 : vector<64x128xf32>
    %cst_22 = arith.constant 0.000000e+00 : f32
    %28 = vector.broadcast %cst_22 : f32 to vector<64x128xf32>
    %29 = arith.maximumf %27, %28 : vector<64x128xf32>
    %c0_23 = arith.constant 0 : index
    %c0_24 = arith.constant 0 : index
    %30 = vector.load %arg10[%c0_23, %c0_24] : memref<64x1xf32, #tpu.memory_space<vmem>>, vector<64x1xf32>
    %31 = vector.broadcast %30 : vector<64x1xf32> to vector<64x128xf32>
    %32 = arith.mulf %31, %29 : vector<64x128xf32>
    %cst_25 = arith.constant dense<0.000000e+00> : vector<128xf32>
    %33 = vector.multi_reduction <add>, %32, %cst_25 [0] : vector<64x128xf32> to vector<128xf32>
    %34 = vector.shape_cast %33 : vector<128xf32> to vector<1x128xf32>
    %c0_26 = arith.constant 0 : index
    %c0_27 = arith.constant 0 : index
    %35 = memref.load %arg11[%c0_26, %c0_27] : memref<1x1xf32, #tpu.memory_space<smem>>
    %36 = vector.broadcast %35 : f32 to vector<1x128xf32>
    %37 = arith.addf %34, %36 : vector<1x128xf32>
    %c0_28 = arith.constant 0 : index
    %c0_29 = arith.constant 0 : index
    %38 = vector.load %arg12[%c0_28, %c0_29] : memref<1x128xf32, #tpu.memory_space<vmem>>, vector<1x128xf32>
    tpu.vector_store %arg12[%c0_28, %c0_29], %37 {strides = array<i32>} : memref<1x128xf32, #tpu.memory_space<vmem>>, vector<1x128xf32>,
    return
  }
  func.func @transform_0(%arg0: i32) -> (i32, i32) {
    %c0_i32 = arith.constant 0 : i32
    %c0_i32_0 = arith.constant 0 : i32
    return %c0_i32, %arg0 : i32, i32
  }
  func.func @transform_1(%arg0: i32) -> (i32, i32) {
    %c0_i32 = arith.constant 0 : i32
    %c0_i32_0 = arith.constant 0 : i32
    return %c0_i32, %arg0 : i32, i32
  }
  func.func @transform_2(%arg0: i32) -> (i32, i32) {
    %c0_i32 = arith.constant 0 : i32
    %c0_i32_0 = arith.constant 0 : i32
    %c0_i32_1 = arith.constant 0 : i32
    return %c0_i32, %c0_i32_0 : i32, i32
  }
  func.func @transform_3(%arg0: i32) -> (i32, i32) {
    %c0_i32 = arith.constant 0 : i32
    %c0_i32_0 = arith.constant 0 : i32
    %c0_i32_1 = arith.constant 0 : i32
    return %c0_i32, %c0_i32_0 : i32, i32
  }
  func.func @transform_4(%arg0: i32) -> (i32, i32) {
    %c0_i32 = arith.constant 0 : i32
    %c0_i32_0 = arith.constant 0 : i32
    %c0_i32_1 = arith.constant 0 : i32
    return %c0_i32, %c0_i32_0 : i32, i32
  }
  func.func @transform_5(%arg0: i32) -> (i32, i32) {
    %c0_i32 = arith.constant 0 : i32
    %c0_i32_0 = arith.constant 0 : i32
    %c0_i32_1 = arith.constant 0 : i32
    return %c0_i32, %c0_i32_0 : i32, i32
  }
  func.func @transform_6(%arg0: i32) -> (i32, i32) {
    %c0_i32 = arith.constant 0 : i32
    %c0_i32_0 = arith.constant 0 : i32
    %c0_i32_1 = arith.constant 0 : i32
    return %c0_i32, %c0_i32_0 : i32, i32
  }
  func.func @transform_7(%arg0: i32) -> (i32, i32) {
    %c0_i32 = arith.constant 0 : i32
    %c0_i32_0 = arith.constant 0 : i32
    %c0_i32_1 = arith.constant 0 : i32
    return %c0_i32, %c0_i32_0 : i32, i32
  }
  func.func @transform_8(%arg0: i32) -> (i32, i32) {
    %c0_i32 = arith.constant 0 : i32
    %c0_i32_0 = arith.constant 0 : i32
    %c0_i32_1 = arith.constant 0 : i32
    return %c0_i32, %c0_i32_0 : i32, i32
  }
  func.func @transform_9(%arg0: i32) -> (i32, i32) {
    %c0_i32 = arith.constant 0 : i32
    %c0_i32_0 = arith.constant 0 : i32
    %c0_i32_1 = arith.constant 0 : i32
    return %c0_i32, %c0_i32_0 : i32, i32
  }
  func.func @transform_10(%arg0: i32) -> (i32, i32) {
    %c0_i32 = arith.constant 0 : i32
    %c0_i32_0 = arith.constant 0 : i32
    %c0_i32_1 = arith.constant 0 : i32
    return %c0_i32, %c0_i32_0 : i32, i32
  }
  func.func @transform_11(%arg0: i32) -> (i32, i32) {
    %c0_i32 = arith.constant 0 : i32
    %c0_i32_0 = arith.constant 0 : i32
    return %c0_i32, %arg0 : i32, i32
  }
}

</mosaic_0001>

<llo_original>
// kernel: tpu_custom_call.1
$region0: #{tpu_custom_call.1}
  #allocation0 [shape = 'u32[]', space=smem, size = 0x4, offset = 0x4, fixed_abs, tag = 'smem constant byte address 0x4 - core index']
  #allocation1 [shape = 'u32[72,128]{1,0:T(1,128)}', space=vmem, size = 0x9000, scoped, tag = 'internal scratch']
  #allocation2 [shape = 'f32[1,1]{1,0:T(1,128)S(6)}', space=smem, size = 0x200, scoped, tag = 'scoped memory for tpu_custom_call.1']
  %s0 = inlined_call_operand.vmem [shape: f32[8,128], index: 0, kind: input, shape index: {}]
  %s1 = inlined_call_operand.vmem [shape: f32[3,128], index: 1, kind: input, shape index: {}]
  %s2 = inlined_call_operand.vmem [shape: bf16[64,8], index: 2, kind: input, shape index: {}]
  %s3 = inlined_call_operand.vmem [shape: bf16[64,3], index: 3, kind: input, shape index: {}]
  %s4 = inlined_call_operand.vmem [shape: f32[64,1], index: 4, kind: input, shape index: {}]
  %s5 = inlined_call_operand.vmem [shape: bf16[64,64], index: 5, kind: input, shape index: {}]
  %s6 = inlined_call_operand.vmem [shape: f32[64,1], index: 6, kind: input, shape index: {}]
  %s7 = inlined_call_operand.vmem [shape: bf16[64,64], index: 7, kind: input, shape index: {}]
  %s8 = inlined_call_operand.vmem [shape: f32[64,1], index: 8, kind: input, shape index: {}]
  %s9 = inlined_call_operand.vmem [shape: f32[64,1], index: 9, kind: input, shape index: {}]
  %s10 = inlined_call_operand.<no memory space> [shape: f32[1,1], index: 10, kind: input, shape index: {}]
  %s11 = inlined_call_operand.hbm [shape: f32[1,128], index: 11, kind: output, shape index: {}]
  %s12 = sld [smem:[#allocation0]]
  $region54: #{tpu_custom_call.1} parent=0
    _
  %s14 = ssub.s32 1, %s12
  %s15 = scalar_select 0, %s14, %s12
  %16 = sst [smem:[#allocation2]] %s10
  $region1: #{tpu_custom_call.1} parent=0
    #allocation3 [shape = 'u8[512]{0}', space=vmem, size = 0x400, scoped, tag = 'output window, operand 0, single buffered']
    #allocation4 [shape = 's32[1]{0}', space=sflag, size = 0x4, scoped, tag = 'scoped memory for tpu_custom_call.1']
    %17 = vsyncpa [#allocation4], 0
    // Predicated region
    $region2: #{tpu_custom_call.1} parent=1 // pred_check
      _
    $region3: #{tpu_custom_call.1} parent=1 // pred_check_branch
      %19 = sbr.rel (0) target = $region5
    $region4: #{tpu_custom_call.1} parent=1 // pred_region
      _
    $region5: #{tpu_custom_call.1} parent=1 // pred_fallthru
      _
    // Predicated region
    $region6: #{tpu_custom_call.1} parent=1 // pred_check
      _
    $region7: #{tpu_custom_call.1} parent=1 // pred_check_branch
      %21 = sbr.rel (0) target = $region9
    $region8: #{tpu_custom_call.1} parent=1 // pred_region
      _
    $region9: #{tpu_custom_call.1} parent=1 // pred_fallthru
      _
    // Predicated region
    $region10: #{tpu_custom_call.1} parent=1 // pred_check
      _
    $region11: #{tpu_custom_call.1} parent=1 // pred_check_branch
      %23 = sbr.rel (0) target = $region13
    $region12: #{tpu_custom_call.1} parent=1 // pred_region
      _
    $region13: #{tpu_custom_call.1} parent=1 // pred_fallthru
      _
    // Predicated region
    $region14: #{tpu_custom_call.1} parent=1 // pred_check
      _
    $region15: #{tpu_custom_call.1} parent=1 // pred_check_branch
      %25 = sbr.rel (0) target = $region17
    $region16: #{tpu_custom_call.1} parent=1 // pred_region
      _
    $region17: #{tpu_custom_call.1} parent=1 // pred_fallthru
      _
    // Predicated region
    $region18: #{tpu_custom_call.1} parent=1 // pred_check
      _
    $region19: #{tpu_custom_call.1} parent=1 // pred_check_branch
      %27 = sbr.rel (0) target = $region21
    $region20: #{tpu_custom_call.1} parent=1 // pred_region
      _
    $region21: #{tpu_custom_call.1} parent=1 // pred_fallthru
      _
    // Predicated region
    $region22: #{tpu_custom_call.1} parent=1 // pred_check
      _
    $region23: #{tpu_custom_call.1} parent=1 // pred_check_branch
      %29 = sbr.rel (0) target = $region25
    $region24: #{tpu_custom_call.1} parent=1 // pred_region
      _
    $region25: #{tpu_custom_call.1} parent=1 // pred_fallthru
      _
    // Predicated region
    $region26: #{tpu_custom_call.1} parent=1 // pred_check
      _
    $region27: #{tpu_custom_call.1} parent=1 // pred_check_branch
      %31 = sbr.rel (0) target = $region29
    $region28: #{tpu_custom_call.1} parent=1 // pred_region
      _
    $region29: #{tpu_custom_call.1} parent=1 // pred_fallthru
      _
    // Predicated region
    $region30: #{tpu_custom_call.1} parent=1 // pred_check
      _
    $region31: #{tpu_custom_call.1} parent=1 // pred_check_branch
      %33 = sbr.rel (0) target = $region33
    $region32: #{tpu_custom_call.1} parent=1 // pred_region
      _
    $region33: #{tpu_custom_call.1} parent=1 // pred_fallthru
      _
    // Predicated region
    $region34: #{tpu_custom_call.1} parent=1 // pred_check
      _
    $region35: #{tpu_custom_call.1} parent=1 // pred_check_branch
      %35 = sbr.rel (0) target = $region37
    $region36: #{tpu_custom_call.1} parent=1 // pred_region
      _
    $region37: #{tpu_custom_call.1} parent=1 // pred_fallthru
      _
    // Predicated region
    $region38: #{tpu_custom_call.1} parent=1 // pred_check
      _
    $region39: #{tpu_custom_call.1} parent=1 // pred_check_branch
      %37 = sbr.rel (0) target = $region41
    $region40: #{tpu_custom_call.1} parent=1 // pred_region
      _
    $region41: #{tpu_custom_call.1} parent=1 // pred_fallthru
      _
    // Predicated region
    $region42: #{tpu_custom_call.1} parent=1 // pred_check
      _
    $region43: #{tpu_custom_call.1} parent=1 // pred_check_branch
      %39 = sbr.rel (0) target = $region45
    $region44: #{tpu_custom_call.1} parent=1 // pred_region
      _
    $region45: #{tpu_custom_call.1} parent=1 // pred_fallthru
      _
    %v41 = vld [vmem:[%s0] sm:$0xff]
    %v42 = vpack.c.bf16 %v41, %v41
    %v43 = vld [vmem:[%s1] sm:$0x7]
    %v44 = vpack.c.bf16 %v43, %v43
    %v45 = vld [vmem:[%s2] sm:$0xf]
    %v46 = vld [vmem:[%s2 + $0x4] sm:$0xf]
    %v47 = vld [vmem:[%s2 + $0x8] sm:$0xf]
    %v48 = vld [vmem:[%s2 + $0xc] sm:$0xf]
    %v49 = vld [vmem:[%s2 + $0x10] sm:$0xf]
    %v50 = vld [vmem:[%s2 + $0x14] sm:$0xf]
    %v51 = vld [vmem:[%s2 + $0x18] sm:$0xf]
    %v52 = vld [vmem:[%s2 + $0x1c] sm:$0xf]
    %v53 = vld [vmem:[%s3] sm:$0xf]
    %v54 = vld [vmem:[%s3 + $0x4] sm:$0xf]
    %v55 = vld [vmem:[%s3 + $0x8] sm:$0xf]
    %v56 = vld [vmem:[%s3 + $0xc] sm:$0xf]
    %v57 = vld [vmem:[%s3 + $0x10] sm:$0xf]
    %v58 = vld [vmem:[%s3 + $0x14] sm:$0xf]
    %v59 = vld [vmem:[%s3 + $0x18] sm:$0xf]
    %v60 = vld [vmem:[%s3 + $0x1c] sm:$0xf]
    %v69 = vunpack.c.l.b16 %v53
    %v70 = vunpack.c.l.b16 %v54
    %v71 = vunpack.c.l.b16 %v55
    %v72 = vunpack.c.l.b16 %v56
    %v73 = vunpack.c.l.b16 %v57
    %v74 = vunpack.c.l.b16 %v58
    %v75 = vunpack.c.l.b16 %v59
    %v76 = vunpack.c.l.b16 %v60
    %v77 = vpack.c.b16 %v70, %v69
    %v78 = vpack.c.b16 %v72, %v71
    %v79 = vpack.c.b16 %v74, %v73
    %v80 = vpack.c.b16 %v76, %v75
    %vm81 = vcmask 23552
    %v83 = vsel %vm81, %v77, 0
    %v86 = vsel %vm81, %v78, 0
    %v89 = vsel %vm81, %v79, 0
    %v92 = vsel %vm81, %v80, 0
    %vm94 = vcmask 1040384
    %vm95 = vcmask 1041408
    %v96 = vsel %vm94, 4294967295, 65535
    %v97 = vsel %vm95, %v96, 0
    %v99 = vand.u32 %v44, %v97
    %101 = vmatpush.bf16.msra.mxu0 0
    %102 = vmatpush.bf16.msra.mxu0 0
    %103 = vmatpush.bf16.msra.mxu0 0
    %104 = vmatpush.bf16.msra.mxu0 0
    %105 = vmatpush.bf16.msra.mxu0 0
    %106 = vmatpush.bf16.msra.mxu0 0
    %107 = vmatpush.bf16.msra.mxu0 0
    %108 = vmatpush.bf16.msra.mxu0 %v99
    %109 = vmatmul.bf16.gmra.mxu0 %v83
    %v110 = vpop.f32.mrf.mxu0
    %v111 = vadd.f32 0.0, %v110
    %v112 = vpop.f32.mrf.mxu0
    %v113 = vadd.f32 0.0, %v112
    %114 = vmatmul.bf16.gmra.mxu0 %v86
    %v115 = vpop.f32.mrf.mxu0
    %v116 = vadd.f32 0.0, %v115
    %v117 = vpop.f32.mrf.mxu0
    %v118 = vadd.f32 0.0, %v117
    %119 = vmatmul.bf16.gmra.mxu0 %v89
    %v120 = vpop.f32.mrf.mxu0
    %v121 = vadd.f32 0.0, %v120
    %v122 = vpop.f32.mrf.mxu0
    %v123 = vadd.f32 0.0, %v122
    %124 = vmatmul.bf16.gmra.mxu0 %v92
    %v125 = vpop.f32.mrf.mxu0
    %v126 = vadd.f32 0.0, %v125
    %v127 = vpop.f32.mrf.mxu0
    %v128 = vadd.f32 0.0, %v127
    %129 = vdwg.mxu0
    %v138 = vunpack.c.l.b16 %v45
    %v139 = vunpack.c.l.b16 %v46
    %v140 = vunpack.c.l.b16 %v47
    %v141 = vunpack.c.l.b16 %v48
    %v142 = vunpack.c.l.b16 %v49
    %v143 = vunpack.c.l.b16 %v50
    %v144 = vunpack.c.l.b16 %v51
    %v145 = vunpack.c.l.b16 %v52
    %v146 = vpack.c.b16 %v139, %v138
    %v147 = vpack.c.b16 %v141, %v140
    %v148 = vpack.c.b16 %v143, %v142
    %v149 = vpack.c.b16 %v145, %v144
    %vm150 = vcmask 64512
    %v152 = vsel %vm150, %v146, 0
    %v155 = vsel %vm150, %v147, 0
    %v158 = vsel %vm150, %v148, 0
    %v161 = vsel %vm150, %v149, 0
    %vm163 = vcmask 1043456
    %v165 = vsel %vm163, %v42, 0
    %167 = vmatpush.bf16.msra.mxu0 0
    %168 = vmatpush.bf16.msra.mxu0 0
    %169 = vmatpush.bf16.msra.mxu0 0
    %170 = vmatpush.bf16.msra.mxu0 0
    %171 = vmatpush.bf16.msra.mxu0 0
    %172 = vmatpush.bf16.msra.mxu0 0
    %173 = vmatpush.bf16.msra.mxu0 0
    %174 = vmatpush.bf16.msra.mxu0 %v165
    %175 = vmatmul.bf16.gmra.mxu0 %v152
    %v176 = vpop.f32.mrf.mxu0
    %v177 = vadd.f32 %v111, %v176
    %v178 = vpop.f32.mrf.mxu0
    %v179 = vadd.f32 %v113, %v178
    %180 = vmatmul.bf16.gmra.mxu0 %v155
    %v181 = vpop.f32.mrf.mxu0
    %v182 = vadd.f32 %v116, %v181
    %v183 = vpop.f32.mrf.mxu0
    %v184 = vadd.f32 %v118, %v183
    %185 = vmatmul.bf16.gmra.mxu0 %v158
    %v186 = vpop.f32.mrf.mxu0
    %v187 = vadd.f32 %v121, %v186
    %v188 = vpop.f32.mrf.mxu0
    %v189 = vadd.f32 %v123, %v188
    %190 = vmatmul.bf16.gmra.mxu0 %v161
    %v191 = vpop.f32.mrf.mxu0
    %v192 = vadd.f32 %v126, %v191
    %v193 = vpop.f32.mrf.mxu0
    %v194 = vadd.f32 %v128, %v193
    %195 = vdwg.mxu0
    %v196 = vld [vmem:[%s4] sm:$0xff]
    %v197 = vld [vmem:[%s4 + $0x8] sm:$0xff]
    %v198 = vld [vmem:[%s4 + $0x10] sm:$0xff]
    %v199 = vld [vmem:[%s4 + $0x18] sm:$0xff]
    %v200 = vld [vmem:[%s4 + $0x20] sm:$0xff]
    %v201 = vld [vmem:[%s4 + $0x28] sm:$0xff]
    %v202 = vld [vmem:[%s4 + $0x30] sm:$0xff]
    %v203 = vld [vmem:[%s4 + $0x38] sm:$0xff]
    %205 = vset.pattern.permute.xlu0 0
    %206 = vperm.xlu0 %205, %v196
    %v207 = vpop.permute.xlu0 %206
    %210 = vset.pattern.permute.xlu0 0
    %211 = vperm.xlu0 %210, %v197
    %v212 = vpop.permute.xlu0 %211
    %215 = vset.pattern.permute.xlu0 0
    %216 = vperm.xlu0 %215, %v198
    %v217 = vpop.permute.xlu0 %216
    %220 = vset.pattern.permute.xlu0 0
    %221 = vperm.xlu0 %220, %v199
    %v222 = vpop.permute.xlu0 %221
    %225 = vset.pattern.permute.xlu0 0
    %226 = vperm.xlu0 %225, %v200
    %v227 = vpop.permute.xlu0 %226
    %230 = vset.pattern.permute.xlu0 0
    %231 = vperm.xlu0 %230, %v201
    %v232 = vpop.permute.xlu0 %231
    %235 = vset.pattern.permute.xlu0 0
    %236 = vperm.xlu0 %235, %v202
    %v237 = vpop.permute.xlu0 %236
    %240 = vset.pattern.permute.xlu0 0
    %241 = vperm.xlu0 %240, %v203
    %v242 = vpop.permute.xlu0 %241
    %v244 = vadd.f32 %v177, %v207
    %v245 = vadd.f32 %v179, %v212
    %v246 = vadd.f32 %v182, %v217
    %v247 = vadd.f32 %v184, %v222
    %v248 = vadd.f32 %v187, %v227
    %v249 = vadd.f32 %v189, %v232
    %v250 = vadd.f32 %v192, %v237
    %v251 = vadd.f32 %v194, %v242
    %v252 = vmax.f32 %v244, 0.0
    %v253 = vmax.f32 %v245, 0.0
    %v254 = vmax.f32 %v246, 0.0
    %v255 = vmax.f32 %v247, 0.0
    %v256 = vmax.f32 %v248, 0.0
    %v257 = vmax.f32 %v249, 0.0
    %v258 = vmax.f32 %v250, 0.0
    %v259 = vmax.f32 %v251, 0.0
    %v260 = vld [vmem:[%s5] sm:$0xf]
    %v261 = vld [vmem:[%s5 + $0x4] sm:$0xf]
    %v262 = vld [vmem:[%s5 + $0x8] sm:$0xf]
    %v263 = vld [vmem:[%s5 + $0xc] sm:$0xf]
    %v264 = vld [vmem:[%s5 + $0x10] sm:$0xf]
    %v265 = vld [vmem:[%s5 + $0x14] sm:$0xf]
    %v266 = vld [vmem:[%s5 + $0x18] sm:$0xf]
    %v267 = vld [vmem:[%s5 + $0x1c] sm:$0xf]
    %v268 = vpack.c.bf16 %v253, %v252
    %v269 = vpack.c.bf16 %v255, %v254
    %v270 = vpack.c.bf16 %v257, %v256
    %v271 = vpack.c.bf16 %v259, %v258
    %v272 = vld [vmem:[%s6] sm:$0xff]
    %v273 = vld [vmem:[%s6 + $0x8] sm:$0xff]
    %v274 = vld [vmem:[%s6 + $0x10] sm:$0xff]
    %v275 = vld [vmem:[%s6 + $0x18] sm:$0xff]
    %v276 = vld [vmem:[%s6 + $0x20] sm:$0xff]
    %v277 = vld [vmem:[%s6 + $0x28] sm:$0xff]
    %v278 = vld [vmem:[%s6 + $0x30] sm:$0xff]
    %v279 = vld [vmem:[%s6 + $0x38] sm:$0xff]
    %281 = vset.pattern.permute.xlu0 0
    %282 = vperm.xlu0 %281, %v272
    %v283 = vpop.permute.xlu0 %282
    %286 = vset.pattern.permute.xlu0 0
    %287 = vperm.xlu0 %286, %v273
    %v288 = vpop.permute.xlu0 %287
    %291 = vset.pattern.permute.xlu0 0
    %292 = vperm.xlu0 %291, %v274
    %v293 = vpop.permute.xlu0 %292
    %296 = vset.pattern.permute.xlu0 0
    %297 = vperm.xlu0 %296, %v275
    %v298 = vpop.permute.xlu0 %297
    %301 = vset.pattern.permute.xlu0 0
    %302 = vperm.xlu0 %301, %v276
    %v303 = vpop.permute.xlu0 %302
    %306 = vset.pattern.permute.xlu0 0
    %307 = vperm.xlu0 %306, %v277
    %v308 = vpop.permute.xlu0 %307
    %311 = vset.pattern.permute.xlu0 0
    %312 = vperm.xlu0 %311, %v278
    %v313 = vpop.permute.xlu0 %312
    %316 = vset.pattern.permute.xlu0 0
    %317 = vperm.xlu0 %316, %v279
    %v318 = vpop.permute.xlu0 %317
    %v328 = vunpack.c.l.b16 %v260
    %v329 = vunpack.c.l.b16 %v261
    %v330 = vunpack.c.l.b16 %v262
    %v331 = vunpack.c.l.b16 %v263
    %v332 = vunpack.c.l.b16 %v264
    %v333 = vunpack.c.l.b16 %v265
    %v334 = vunpack.c.l.b16 %v266
    %v335 = vunpack.c.l.b16 %v267
    %v336 = vpack.c.b16 %v329, %v328
    %v337 = vpack.c.b16 %v331, %v330
    %v338 = vpack.c.b16 %v333, %v332
    %v339 = vpack.c.b16 %v335, %v334
    %vm340 = vcmask 523264
    %v342 = vsel %vm340, %v336, 0
    %v345 = vsel %vm340, %v337, 0
    %v348 = vsel %vm340, %v338, 0
    %v351 = vsel %vm340, %v339, 0
    %353 = vmatpush.bf16.msra.mxu0 0
    %354 = vmatpush.bf16.msra.mxu0 0
    %355 = vmatpush.bf16.msra.mxu0 0
    %356 = vmatpush.bf16.msra.mxu0 0
    %357 = vmatpush.bf16.msra.mxu0 %v271
    %358 = vmatpush.bf16.msra.mxu0 %v270
    %359 = vmatpush.bf16.msra.mxu0 %v269
    %360 = vmatpush.bf16.msra.mxu0 %v268
    %361 = vmatmul.bf16.gmra.mxu0 %v342
    %v362 = vpop.f32.mrf.mxu0
    %v363 = vadd.f32 %v283, %v362
    %v364 = vpop.f32.mrf.mxu0
    %v365 = vadd.f32 %v288, %v364
    %366 = vmatmul.bf16.gmra.mxu0 %v345
    %v367 = vpop.f32.mrf.mxu0
    %v368 = vadd.f32 %v293, %v367
    %v369 = vpop.f32.mrf.mxu0
    %v370 = vadd.f32 %v298, %v369
    %371 = vmatmul.bf16.gmra.mxu0 %v348
    %v372 = vpop.f32.mrf.mxu0
    %v373 = vadd.f32 %v303, %v372
    %v374 = vpop.f32.mrf.mxu0
    %v375 = vadd.f32 %v308, %v374
    %376 = vmatmul.bf16.gmra.mxu0 %v351
    %v377 = vpop.f32.mrf.mxu0
    %v378 = vadd.f32 %v313, %v377
    %v379 = vpop.f32.mrf.mxu0
    %v380 = vadd.f32 %v318, %v379
    %381 = vdwg.mxu0
    %v382 = vmax.f32 %v363, 0.0
    %v383 = vmax.f32 %v365, 0.0
    %v384 = vmax.f32 %v368, 0.0
    %v385 = vmax.f32 %v370, 0.0
    %v386 = vmax.f32 %v373, 0.0
    %v387 = vmax.f32 %v375, 0.0
    %v388 = vmax.f32 %v378, 0.0
    %v389 = vmax.f32 %v380, 0.0
    %v390 = vld [vmem:[%s7] sm:$0xf]
    %v391 = vld [vmem:[%s7 + $0x4] sm:$0xf]
    %v392 = vld [vmem:[%s7 + $0x8] sm:$0xf]
    %v393 = vld [vmem:[%s7 + $0xc] sm:$0xf]
    %v394 = vld [vmem:[%s7 + $0x10] sm:$0xf]
    %v395 = vld [vmem:[%s7 + $0x14] sm:$0xf]
    %v396 = vld [vmem:[%s7 + $0x18] sm:$0xf]
    %v397 = vld [vmem:[%s7 + $0x1c] sm:$0xf]
    %v398 = vpack.c.bf16 %v383, %v382
    %v399 = vpack.c.bf16 %v385, %v384
    %v400 = vpack.c.bf16 %v387, %v386
    %v401 = vpack.c.bf16 %v389, %v388
    %v402 = vld [vmem:[%s8] sm:$0xff]
    %v403 = vld [vmem:[%s8 + $0x8] sm:$0xff]
    %v404 = vld [vmem:[%s8 + $0x10] sm:$0xff]
    %v405 = vld [vmem:[%s8 + $0x18] sm:$0xff]
    %v406 = vld [vmem:[%s8 + $0x20] sm:$0xff]
    %v407 = vld [vmem:[%s8 + $0x28] sm:$0xff]
    %v408 = vld [vmem:[%s8 + $0x30] sm:$0xff]
    %v409 = vld [vmem:[%s8 + $0x38] sm:$0xff]
    %411 = vset.pattern.permute.xlu0 0
    %412 = vperm.xlu0 %411, %v402
    %v413 = vpop.permute.xlu0 %412
    %416 = vset.pattern.permute.xlu0 0
    %417 = vperm.xlu0 %416, %v403
    %v418 = vpop.permute.xlu0 %417
    %421 = vset.pattern.permute.xlu0 0
    %422 = vperm.xlu0 %421, %v404
    %v423 = vpop.permute.xlu0 %422
    %426 = vset.pattern.permute.xlu0 0
    %427 = vperm.xlu0 %426, %v405
    %v428 = vpop.permute.xlu0 %427
    %431 = vset.pattern.permute.xlu0 0
    %432 = vperm.xlu0 %431, %v406
    %v433 = vpop.permute.xlu0 %432
    %436 = vset.pattern.permute.xlu0 0
    %437 = vperm.xlu0 %436, %v407
    %v438 = vpop.permute.xlu0 %437
    %441 = vset.pattern.permute.xlu0 0
    %442 = vperm.xlu0 %441, %v408
    %v443 = vpop.permute.xlu0 %442
    %446 = vset.pattern.permute.xlu0 0
    %447 = vperm.xlu0 %446, %v409
    %v448 = vpop.permute.xlu0 %447
    %v458 = vunpack.c.l.b16 %v390
    %v459 = vunpack.c.l.b16 %v391
    %v460 = vunpack.c.l.b16 %v392
    %v461 = vunpack.c.l.b16 %v393
    %v462 = vunpack.c.l.b16 %v394
    %v463 = vunpack.c.l.b16 %v395
    %v464 = vunpack.c.l.b16 %v396
    %v465 = vunpack.c.l.b16 %v397
    %v466 = vpack.c.b16 %v459, %v458
    %v467 = vpack.c.b16 %v461, %v460
    %v468 = vpack.c.b16 %v463, %v462
    %v469 = vpack.c.b16 %v465, %v464
    %v471 = vsel %vm340, %v466, 0
    %v474 = vsel %vm340, %v467, 0
    %v477 = vsel %vm340, %v468, 0
    %v480 = vsel %vm340, %v469, 0
    %482 = vmatpush.bf16.msra.mxu0 0
    %483 = vmatpush.bf16.msra.mxu0 0
    %484 = vmatpush.bf16.msra.mxu0 0
    %485 = vmatpush.bf16.msra.mxu0 0
    %486 = vmatpush.bf16.msra.mxu0 %v401
    %487 = vmatpush.bf16.msra.mxu0 %v400
    %488 = vmatpush.bf16.msra.mxu0 %v399
    %489 = vmatpush.bf16.msra.mxu0 %v398
    %490 = vmatmul.bf16.gmra.mxu0 %v471
    %v491 = vpop.f32.mrf.mxu0
    %v492 = vadd.f32 %v413, %v491
    %v493 = vpop.f32.mrf.mxu0
    %v494 = vadd.f32 %v418, %v493
    %495 = vmatmul.bf16.gmra.mxu0 %v474
    %v496 = vpop.f32.mrf.mxu0
    %v497 = vadd.f32 %v423, %v496
    %v498 = vpop.f32.mrf.mxu0
    %v499 = vadd.f32 %v428, %v498
    %500 = vmatmul.bf16.gmra.mxu0 %v477
    %v501 = vpop.f32.mrf.mxu0
    %v502 = vadd.f32 %v433, %v501
    %v503 = vpop.f32.mrf.mxu0
    %v504 = vadd.f32 %v438, %v503
    %505 = vmatmul.bf16.gmra.mxu0 %v480
    %v506 = vpop.f32.mrf.mxu0
    %v507 = vadd.f32 %v443, %v506
    %v508 = vpop.f32.mrf.mxu0
    %v509 = vadd.f32 %v448, %v508
    %510 = vdwg.mxu0
    %v511 = vmax.f32 %v492, 0.0
    %v512 = vmax.f32 %v494, 0.0
    %v513 = vmax.f32 %v497, 0.0
    %v514 = vmax.f32 %v499, 0.0
    %v515 = vmax.f32 %v502, 0.0
    %v516 = vmax.f32 %v504, 0.0
    %v517 = vmax.f32 %v507, 0.0
    %v518 = vmax.f32 %v509, 0.0
    %v519 = vld [vmem:[%s9] sm:$0xff]
    %v520 = vld [vmem:[%s9 + $0x8] sm:$0xff]
    %v521 = vld [vmem:[%s9 + $0x10] sm:$0xff]
    %v522 = vld [vmem:[%s9 + $0x18] sm:$0xff]
    %v523 = vld [vmem:[%s9 + $0x20] sm:$0xff]
    %v524 = vld [vmem:[%s9 + $0x28] sm:$0xff]
    %v525 = vld [vmem:[%s9 + $0x30] sm:$0xff]
    %v526 = vld [vmem:[%s9 + $0x38] sm:$0xff]
    %528 = vset.pattern.permute.xlu0 0
    %529 = vperm.xlu0 %528, %v519
    %v530 = vpop.permute.xlu0 %529
    %533 = vset.pattern.permute.xlu0 0
    %534 = vperm.xlu0 %533, %v520
    %v535 = vpop.permute.xlu0 %534
    %538 = vset.pattern.permute.xlu0 0
    %539 = vperm.xlu0 %538, %v521
    %v540 = vpop.permute.xlu0 %539
    %543 = vset.pattern.permute.xlu0 0
    %544 = vperm.xlu0 %543, %v522
    %v545 = vpop.permute.xlu0 %544
    %548 = vset.pattern.permute.xlu0 0
    %549 = vperm.xlu0 %548, %v523
    %v550 = vpop.permute.xlu0 %549
    %553 = vset.pattern.permute.xlu0 0
    %554 = vperm.xlu0 %553, %v524
    %v555 = vpop.permute.xlu0 %554
    %558 = vset.pattern.permute.xlu0 0
    %559 = vperm.xlu0 %558, %v525
    %v560 = vpop.permute.xlu0 %559
    %563 = vset.pattern.permute.xlu0 0
    %564 = vperm.xlu0 %563, %v526
    %v565 = vpop.permute.xlu0 %564
    %v567 = vmul.f32 %v530, %v511
    %v568 = vmul.f32 %v535, %v512
    %v569 = vmul.f32 %v540, %v513
    %v570 = vmul.f32 %v545, %v514
    %v571 = vmul.f32 %v550, %v515
    %v572 = vmul.f32 %v555, %v516
    %v573 = vmul.f32 %v560, %v517
    %v574 = vmul.f32 %v565, %v518
    %v575 = vadd.f32 %v567, %v568
    %v576 = vadd.f32 %v575, %v569
    %v577 = vadd.f32 %v576, %v570
    %v578 = vadd.f32 %v577, %v571
    %v579 = vadd.f32 %v578, %v572
    %v580 = vadd.f32 %v579, %v573
    %v581 = vadd.f32 %v580, %v574
    %v582 = vrot.slane %v581, 4
    %v583 = vadd.f32 %v581, %v582
    %v584 = vrot.slane %v583, 2
    %v585 = vadd.f32 %v583, %v584
    %v586 = vrot.slane %v585, 1
    %v587 = vadd.f32 %v585, %v586
    %s588 = sld [smem:[#allocation2]]
    %v589 = vstv %s588
    %v590 = vadd.f32 %v587, %v589
    %591 = vst [vmem:[#allocation3] sm:$0x1] %v590
    // Predicated region
    $region46: #{tpu_custom_call.1} parent=1 // pred_check
      _
    $region47: #{tpu_custom_call.1} parent=1 // pred_check_branch
      %593 = sbr.rel (0) target = $region49
    $region48: #{tpu_custom_call.1} parent=1 // pred_region
      %595 = vsyncadd [#allocation4], 0
      %s597 = sshll.u32 [#allocation3], 4
      %s598 = int_to_ptr.vmem [resolvable:$true] %s597
      %s599 = sshll.u32 %s11, 4
      %s600 = int_to_ptr.hbm [resolvable:$true] %s599
      %602 = dma.vmem_to_hbm [thread:$0]  %s598, 16, %s600, [#allocation4]
    $region49: #{tpu_custom_call.1} parent=1 // pred_fallthru
      _
    // Predicated region
    $region50: #{tpu_custom_call.1} parent=1 // pred_check
      _
    $region51: #{tpu_custom_call.1} parent=1 // pred_check_branch
      %604 = sbr.rel (0) target = $region53
    $region52: #{tpu_custom_call.1} parent=1 // pred_region
      %606 = dma.done [#allocation4], 16
    $region53: #{tpu_custom_call.1} parent=1 // pred_fallthru
      _
    %607 = vsyncpa [#allocation4], 1

</llo_original>
